<compile_context>
chip_gen: v7x
topology: tpu7x:2x2x1
jax: 0.10.0
libtpu: 0.0.40
codegen_flags: <defaults>
</compile_context>

<pallas_src>
import jax
import jax.numpy as jnp
from jax.experimental import pallas as pl
from jax.experimental.pallas import tpu as pltpu

DIGIT = 200000.0
_MIB = 1 << 20


def _cdiv(a, b):
    return -(-a // b)


def _round_up(x, m):
    return _cdiv(x, m) * m


def _vmem_capacity_bytes():
    """Physical per-core VMEM; conservative 64 MiB (v7x) fallback."""
    try:
        info = pltpu.get_tpu_info()
        cap = getattr(info, "vmem_capacity_bytes", None)
        if cap:
            return int(cap)
    except Exception:
        pass
    return 64 * _MIB


def _plan_tiling(L, B, tile_rows=None):
    """Pick (tile_rows, n_splits, n_tiles, vmem_limit_bytes) for location size L."""
    phys = _vmem_capacity_bytes()
    # Double-buffer budget for the streamed theta/Z/adj/yt tiles:
    #   v7x (64 MiB physical) -> 40 MiB ; v5e/v6e (128 MiB physical) -> 56 MiB.
    tile_budget = min(56 * _MIB, max(12 * _MIB, phys - 24 * _MIB))

    # Per tile row, double buffered: theta f32 + Z f32 + adj int8 + yt f32.
    bytes_per_row = 2 * ((4 + 4 + 1) * L + 4)
    if tile_rows is None:
        tm = (tile_budget // bytes_per_row) // 32 * 32
    else:
        tm = _round_up(int(tile_rows), 32)
    tm = max(32, min(2048, tm))

    # Force >= 2 row tiles when L allows it so the leading "parallel" split axis
    # can occupy both TensorCores on v7x (harmless on single-core chips).
    min_tiles = 2 if L >= 64 else 1
    tm = min(tm, _round_up(_cdiv(L, min_tiles), 32))

    total_tiles = _cdiv(L, tm)
    n_splits = 2 if total_tiles >= 2 else 1
    n_tiles = _cdiv(total_tiles, n_splits)
    # Rebalance tm over the n_splits*n_tiles tiles to minimize row padding;
    # this never exceeds the budget-derived tm above.
    tm = _round_up(_cdiv(L, n_splits * n_tiles), 32)

    est = bytes_per_row * tm + 4 * B * L + 12 * _MIB
    vmem_limit = int(min(phys - 2 * _MIB, max(tile_budget + 16 * _MIB, est)))
    return tm, n_splits, n_tiles, vmem_limit


def _ncgm_kernel(theta_ref, z_ref, adj_ref, yt_ref,
                 obj_ref, et_ref, z2_ref,
                 z2_acc, obj_acc, et_acc):
    i = pl.program_id(1)          # row-tile (reduction) axis
    b = pl.program_id(2)          # batch axis (innermost -> adj DMA reused across batch)

    @pl.when(i == 0)
    def _init():
        z2_acc[b] = jnp.zeros(z2_acc.shape[1:], z2_acc.dtype)
        obj_acc[b] = jnp.zeros(obj_acc.shape[1:], obj_acc.dtype)
        et_acc[b] = jnp.zeros(et_acc.shape[1:], et_acc.dtype)

    theta = jnp.maximum(theta_ref[...], 0.01)
    z = jnp.maximum(z_ref[...], 1e-10)
    adj = adj_ref[...].astype(jnp.float32)          # int8 0/1 mask -> f32

    zm = z * adj
    # Exact two-log form (matches the PyTorch formula; EUP has slack in this
    # memory-bound kernel and the approx-reciprocal fold risked a summed bias).
    obj = zm * (jnp.log(theta) - jnp.log(z) + 1.0)

    tm, lanes = zm.shape
    ones_col = jnp.ones((lanes, 1), jnp.float32)
    ones_row = jnp.ones((1, tm), jnp.float32)

    # Row / column reductions on the otherwise-idle MXU.
    z1 = jnp.dot(zm, ones_col, preferred_element_type=jnp.float32)              # (tm, 1)
    z2_acc[b] = z2_acc[b] + jnp.dot(ones_row, zm, preferred_element_type=jnp.float32)
    obj_rows = jnp.dot(ones_row, obj, preferred_element_type=jnp.float32)       # (1, L)
    obj_acc[b] = obj_acc[b] + jnp.sum(obj_rows, keepdims=True)                  # (1, 1)

    # MSELoss(reduction='sum') partial over this row tile: (yt/DIGIT - Z1)^2.
    d_t = yt_ref[...] * (1.0 / DIGIT) - z1
    et_acc[b] = et_acc[b] + jnp.sum(d_t * d_t, keepdims=True)                   # (1, 1)

    @pl.when(i == pl.num_programs(1) - 1)
    def _finalize():
        obj_ref[...] = obj_acc[b]
        et_ref[...] = et_acc[b]
        z2_ref[...] = z2_acc[b]


def ncgm_objective_batched(theta, Z, adj_table, yt, yt1, lam, *, tile_rows=None):
    """Evaluate B independent NCGM objectives (shared adj_table) in one pallas_call.

    theta, Z: (B, L, L); adj_table: (L, L) 0/1 mask; yt, yt1: (B, L); lam: (B,).
    Returns (B,) float32 vector of -G (NCGM_objective.forward per batch element).
    """
    theta = jnp.asarray(theta, jnp.float32)
    Z = jnp.asarray(Z, jnp.float32)
    yt = jnp.asarray(yt, jnp.float32)
    yt1 = jnp.asarray(yt1, jnp.float32)
    # TODO(synk): adj_table is assumed to be a 0/1 mask (exact in int8); a
    # real-valued adjacency would need to stay f32/bf16.
    adj = jnp.asarray(adj_table).astype(jnp.int8)
    lam = jnp.asarray(lam, jnp.float32).reshape(-1)
    B, L, _ = theta.shape

    tm, n_splits, n_tiles, vmem_limit = _plan_tiling(L, B, tile_rows)
    rows = n_splits * n_tiles * tm
    pad = rows - L
    if pad:  # padded rows have adj=0 / yt=0 -> contribute exactly 0 to every sum
        theta = jnp.pad(theta, ((0, 0), (0, pad), (0, 0)), constant_values=1.0)
        Z = jnp.pad(Z, ((0, 0), (0, pad), (0, 0)), constant_values=1.0)
        adj = jnp.pad(adj, ((0, pad), (0, 0)))
        yt = jnp.pad(yt, ((0, 0), (0, pad)))

    yt_col = yt.reshape(B, rows, 1)

    row_block = lambda s, i, b: (b, s * n_tiles + i, 0)
    adj_block = lambda s, i, b: (s * n_tiles + i, 0)      # batch-invariant -> DMA'd once/tile
    part_block = lambda s, i, b: (b, s, 0, 0)

    obj_p, et_p, z2_p = pl.pallas_call(
        _ncgm_kernel,
        out_shape=(
            jax.ShapeDtypeStruct((B, n_splits, 1, 1), jnp.float32),   # obj_L partials
            jax.ShapeDtypeStruct((B, n_splits, 1, 1), jnp.float32),   # et partials
            jax.ShapeDtypeStruct((B, n_splits, 1, L), jnp.float32),   # Z2 col-sum partials
        ),
        grid=(n_splits, n_tiles, B),
        in_specs=[
            pl.BlockSpec((None, tm, L), row_block),   # theta tile
            pl.BlockSpec((None, tm, L), row_block),   # Z tile
            pl.BlockSpec((tm, L), adj_block),         # adj tile (shared across batch)
            pl.BlockSpec((None, tm, 1), row_block),   # yt rows for this tile
        ],
        out_specs=(
            pl.BlockSpec((None, None, 1, 1), part_block),
            pl.BlockSpec((None, None, 1, 1), part_block),
            pl.BlockSpec((None, None, 1, L), part_block),
        ),
        scratch_shapes=[
            pltpu.VMEM((B, 1, L), jnp.float32),   # per-batch Z2 column-sum accumulator
            pltpu.VMEM((B, 1, 1), jnp.float32),   # per-batch obj_L accumulator
            pltpu.VMEM((B, 1, 1), jnp.float32),   # per-batch et accumulator
        ],
        compiler_params=pltpu.CompilerParams(
            dimension_semantics=("parallel", "arbitrary", "arbitrary"),
            vmem_limit_bytes=vmem_limit),
    )(theta, Z, adj, yt_col)

    # Tiny plain-JAX epilogue: combine per-split partials with yt1 / lam.
    obj_b = obj_p.reshape(B, n_splits).sum(axis=1)
    et_b = et_p.reshape(B, n_splits).sum(axis=1)
    z2_b = z2_p.reshape(B, n_splits, L).sum(axis=1)
    et1_b = jnp.sum((yt1 * (1.0 / DIGIT) - z2_b) ** 2, axis=1)
    G = obj_b - 3.0 * lam * et_b - lam * et1_b
    return -G


def ncgm_objective(theta, Z, adj_table, yt, yt1, lam, *, tile_rows=None):
    """Single evaluation, matching NCGM_objective.forward (returns -G)."""
    out = ncgm_objective_batched(
        theta[None], Z[None], adj_table, yt[None], yt1[None],
        jnp.asarray(lam, jnp.float32).reshape(1), tile_rows=tile_rows)
    return out[0]


def ncgm_objective_ref(theta, Z, adj_table, yt, yt1, lam):
    """Plain-JAX reference mirroring the PyTorch forward."""
    theta = jnp.maximum(theta.astype(jnp.float32), 0.01)
    Z = jnp.maximum(Z.astype(jnp.float32), 1e-10)
    obj_arr = Z * (jnp.log(theta) + 1.0 - jnp.log(Z)) * adj_table
    Zm = Z * adj_table
    obj_L = jnp.sum(obj_arr)
    Z1 = jnp.sum(Zm, axis=1)
    Z2 = jnp.sum(Zm, axis=0)
    et = jnp.sum((yt / DIGIT - Z1) ** 2)
    et1 = jnp.sum((yt1 / DIGIT - Z2) ** 2)
    G = obj_L - 3.0 * lam * et - lam * et1
    return -G


if __name__ == "__main__":
    L = 128   # location_size
    B = 3     # number of objective evaluations fused into one pallas_call

    key = jax.random.PRNGKey(0)
    k1, k2, k3, k4, k5 = jax.random.split(key, 5)

    theta = jax.random.uniform(k1, (B, L, L), jnp.float32, minval=0.001, maxval=2.0)
    Z = jax.random.uniform(k2, (B, L, L), jnp.float32, minval=0.0, maxval=1.0)
    adj_table = (jax.random.uniform(k3, (L, L), jnp.float32) < 0.5).astype(jnp.float32)
    yt = jax.random.uniform(k4, (B, L), jnp.float32, minval=0.0, maxval=DIGIT)
    yt1 = jax.random.uniform(k5, (B, L), jnp.float32, minval=0.0, maxval=DIGIT)
    lam = jnp.asarray([0.7, 0.3, 1.1], jnp.float32)

    # Batched evaluation: one pallas_call for all B objectives.
    out = jax.block_until_ready(
        ncgm_objective_batched(theta, Z, adj_table, yt, yt1, lam))
    for b in range(B):
        ref = ncgm_objective_ref(theta[b], Z[b], adj_table, yt[b], yt1[b], float(lam[b]))
        rel = abs(float(out[b]) - float(ref)) / (abs(float(ref)) + 1e-6)
        assert rel < 2e-4, f"batch {b}: pallas={float(out[b])} ref={float(ref)} rel={rel}"

    # Module-equivalent single-call wrapper (B==1 path also uses the split axis).
    single = jax.block_until_ready(
        ncgm_objective(theta[0], Z[0], adj_table, yt[0], yt1[0], 0.7))
    ref0 = ncgm_objective_ref(theta[0], Z[0], adj_table, yt[0], yt1[0], 0.7)
    rel0 = abs(float(single) - float(ref0)) / (abs(float(ref0)) + 1e-6)
    assert rel0 < 2e-4, f"single: pallas={float(single)} ref={float(ref0)} rel={rel0}"

    print("KERNEL_OK")
</pallas_src>

<mosaic_0001>
module attributes {stable_mosaic.version = 11 : i64} {
  func.func @_ncgm_kernel(%arg0: i32, %arg1: i32, %arg2: i32, %arg3: memref<1x64x128xf32, #tpu.memory_space<vmem>>, %arg4: memref<1x64x128xf32, #tpu.memory_space<vmem>>, %arg5: memref<64x128xi8, #tpu.memory_space<vmem>>, %arg6: memref<1x64x1xf32, #tpu.memory_space<vmem>>, %arg7: memref<1x1x1x1xf32, #tpu.memory_space<vmem>>, %arg8: memref<1x1x1x1xf32, #tpu.memory_space<vmem>>, %arg9: memref<1x1x1x128xf32, #tpu.memory_space<vmem>>, %arg10: memref<3x1x128xf32, #tpu.memory_space<vmem>>, %arg11: memref<3x1x1xf32, #tpu.memory_space<vmem>>, %arg12: memref<3x1x1xf32, #tpu.memory_space<vmem>>) attributes {dimension_semantics = [#tpu.dimension_semantics<parallel>, #tpu.dimension_semantics<arbitrary>, #tpu.dimension_semantics<arbitrary>], iteration_bounds = array<i64: 2, 1, 3>, scalar_prefetch = 0 : i64, scratch_operands = 3 : i64, tpu.core_type = #tpu.core_type<tc>, window_params = [{transform_indices = @transform_0, window_bounds = array<i64: 1, 64, 128>}, {transform_indices = @transform_1, window_bounds = array<i64: 1, 64, 128>}, {transform_indices = @transform_2, window_bounds = array<i64: 64, 128>}, {transform_indices = @transform_3, window_bounds = array<i64: 1, 64, 1>}, {transform_indices = @transform_4, window_bounds = array<i64: 1, 1, 1, 1>}, {transform_indices = @transform_5, window_bounds = array<i64: 1, 1, 1, 1>}, {transform_indices = @transform_6, window_bounds = array<i64: 1, 1, 1, 128>}]} {
    %c0_i32 = arith.constant 0 : i32
    %0 = arith.cmpi eq, %arg1, %c0_i32 : i32
    %1 = arith.extui %0 : i1 to i32
    %c0_i32_0 = arith.constant 0 : i32
    %2 = arith.cmpi ne, %1, %c0_i32_0 : i32
    scf.if %2 {
      %cst_35 = arith.constant 0.000000e+00 : f32
      %68 = vector.broadcast %cst_35 : f32 to vector<1x128xf32>
      %69 = arith.index_cast %arg2 : i32 to index
      %c0_36 = arith.constant 0 : index
      %c0_37 = arith.constant 0 : index
      %70 = vector.load %arg10[%69, %c0_36, %c0_37] : memref<3x1x128xf32, #tpu.memory_space<vmem>>, vector<1x1x128xf32>
      %71 = vector.shape_cast %70 : vector<1x1x128xf32> to vector<1x128xf32>
      %72 = vector.shape_cast %68 : vector<1x128xf32> to vector<1x1x128xf32>
      tpu.vector_store %arg10[%69, %c0_36, %c0_37], %72 {strides = array<i32>} : memref<3x1x128xf32, #tpu.memory_space<vmem>>, vector<1x1x128xf32>,
      %cst_38 = arith.constant 0.000000e+00 : f32
      %73 = vector.broadcast %cst_38 : f32 to vector<1x1xf32>
      %74 = arith.index_cast %arg2 : i32 to index
      %c0_39 = arith.constant 0 : index
      %c0_40 = arith.constant 0 : index
      %75 = vector.load %arg11[%74, %c0_39, %c0_40] : memref<3x1x1xf32, #tpu.memory_space<vmem>>, vector<1x1x1xf32>
      %76 = vector.shape_cast %75 : vector<1x1x1xf32> to vector<1x1xf32>
      %77 = vector.shape_cast %73 : vector<1x1xf32> to vector<1x1x1xf32>
      tpu.vector_store %arg11[%74, %c0_39, %c0_40], %77 {strides = array<i32>} : memref<3x1x1xf32, #tpu.memory_space<vmem>>, vector<1x1x1xf32>,
      %cst_41 = arith.constant 0.000000e+00 : f32
      %78 = vector.broadcast %cst_41 : f32 to vector<1x1xf32>
      %79 = arith.index_cast %arg2 : i32 to index
      %c0_42 = arith.constant 0 : index
      %c0_43 = arith.constant 0 : index
      %80 = vector.load %arg12[%79, %c0_42, %c0_43] : memref<3x1x1xf32, #tpu.memory_space<vmem>>, vector<1x1x1xf32>
      %81 = vector.shape_cast %80 : vector<1x1x1xf32> to vector<1x1xf32>
      %82 = vector.shape_cast %78 : vector<1x1xf32> to vector<1x1x1xf32>
      tpu.vector_store %arg12[%79, %c0_42, %c0_43], %82 {strides = array<i32>} : memref<3x1x1xf32, #tpu.memory_space<vmem>>, vector<1x1x1xf32>,
    } else {
    }
    %c0 = arith.constant 0 : index
    %c0_1 = arith.constant 0 : index
    %c0_2 = arith.constant 0 : index
    %3 = vector.load %arg3[%c0, %c0_1, %c0_2] : memref<1x64x128xf32, #tpu.memory_space<vmem>>, vector<1x64x128xf32>
    %4 = vector.shape_cast %3 : vector<1x64x128xf32> to vector<64x128xf32>
    %cst = arith.constant 0.00999999977 : f32
    %5 = vector.broadcast %cst : f32 to vector<64x128xf32>
    %6 = arith.maximumf %4, %5 : vector<64x128xf32>
    %c0_3 = arith.constant 0 : index
    %c0_4 = arith.constant 0 : index
    %c0_5 = arith.constant 0 : index
    %7 = vector.load %arg4[%c0_3, %c0_4, %c0_5] : memref<1x64x128xf32, #tpu.memory_space<vmem>>, vector<1x64x128xf32>
    %8 = vector.shape_cast %7 : vector<1x64x128xf32> to vector<64x128xf32>
    %cst_6 = arith.constant 1.000000e-10 : f32
    %9 = vector.broadcast %cst_6 : f32 to vector<64x128xf32>
    %10 = arith.maximumf %8, %9 : vector<64x128xf32>
    %c0_7 = arith.constant 0 : index
    %c0_8 = arith.constant 0 : index
    %11 = vector.load %arg5[%c0_7, %c0_8] : memref<64x128xi8, #tpu.memory_space<vmem>>, vector<64x128xi8>
    %12 = arith.sitofp %11 : vector<64x128xi8> to vector<64x128xf32>
    %13 = arith.mulf %10, %12 : vector<64x128xf32>
    %14 = math.log %6 : vector<64x128xf32>
    %15 = math.log %10 : vector<64x128xf32>
    %16 = arith.subf %14, %15 : vector<64x128xf32>
    %cst_9 = arith.constant 1.000000e+00 : f32
    %17 = vector.broadcast %cst_9 : f32 to vector<64x128xf32>
    %18 = arith.addf %16, %17 : vector<64x128xf32>
    %19 = arith.mulf %13, %18 : vector<64x128xf32>
    %cst_10 = arith.constant 1.000000e+00 : f32
    %20 = vector.broadcast %cst_10 : f32 to vector<128x1xf32>
    %cst_11 = arith.constant 1.000000e+00 : f32
    %21 = vector.broadcast %cst_11 : f32 to vector<1x64xf32>
    %cst_12 = arith.constant dense<0.000000e+00> : vector<64x1xf32>
    %22 = tpu.matmul %13, %20, %cst_12 {dimension_numbers = #tpu.dot_dimension_numbers<[1], [0], [0], [1], [0, 0, 1, 1], [], []>} : vector<64x128xf32>, vector<128x1xf32>, vector<64x1xf32> -> vector<64x1xf32>
    %23 = arith.index_cast %arg2 : i32 to index
    %c0_13 = arith.constant 0 : index
    %c0_14 = arith.constant 0 : index
    %24 = vector.load %arg10[%23, %c0_13, %c0_14] : memref<3x1x128xf32, #tpu.memory_space<vmem>>, vector<1x1x128xf32>
    %25 = vector.shape_cast %24 : vector<1x1x128xf32> to vector<1x128xf32>
    %cst_15 = arith.constant dense<0.000000e+00> : vector<1x128xf32>
    %26 = tpu.matmul %21, %13, %cst_15 {dimension_numbers = #tpu.dot_dimension_numbers<[1], [0], [0], [1], [0, 0, 1, 1], [], []>} : vector<1x64xf32>, vector<64x128xf32>, vector<1x128xf32> -> vector<1x128xf32>
    %27 = arith.addf %25, %26 : vector<1x128xf32>
    %28 = arith.index_cast %arg2 : i32 to index
    %c0_16 = arith.constant 0 : index
    %c0_17 = arith.constant 0 : index
    %29 = vector.load %arg10[%28, %c0_16, %c0_17] : memref<3x1x128xf32, #tpu.memory_space<vmem>>, vector<1x1x128xf32>
    %30 = vector.shape_cast %29 : vector<1x1x128xf32> to vector<1x128xf32>
    %31 = vector.shape_cast %27 : vector<1x128xf32> to vector<1x1x128xf32>
    tpu.vector_store %arg10[%28, %c0_16, %c0_17], %31 {strides = array<i32>} : memref<3x1x128xf32, #tpu.memory_space<vmem>>, vector<1x1x128xf32>,
    %cst_18 = arith.constant dense<0.000000e+00> : vector<1x128xf32>
    %32 = tpu.matmul %21, %19, %cst_18 {dimension_numbers = #tpu.dot_dimension_numbers<[1], [0], [0], [1], [0, 0, 1, 1], [], []>} : vector<1x64xf32>, vector<64x128xf32>, vector<1x128xf32> -> vector<1x128xf32>
    %33 = arith.index_cast %arg2 : i32 to index
    %c0_19 = arith.constant 0 : index
    %c0_20 = arith.constant 0 : index
    %34 = vector.load %arg11[%33, %c0_19, %c0_20] : memref<3x1x1xf32, #tpu.memory_space<vmem>>, vector<1x1x1xf32>
    %35 = vector.shape_cast %34 : vector<1x1x1xf32> to vector<1x1xf32>
    %36 = vector.shape_cast %32 : vector<1x128xf32> to vector<1x1x128xf32>
    %cst_21 = arith.constant dense<0.000000e+00> : vector<1xf32>
    %37 = vector.multi_reduction <add>, %36, %cst_21 [1, 2] : vector<1x1x128xf32> to vector<1xf32>
    %38 = vector.shape_cast %37 : vector<1xf32> to vector<1x1x1xf32>
    %39 = vector.extract %38[0, 0, 0] : f32 from vector<1x1x1xf32>
    %40 = vector.broadcast %39 : f32 to vector<1x1xf32>
    %41 = arith.addf %35, %40 : vector<1x1xf32>
    %42 = arith.index_cast %arg2 : i32 to index
    %c0_22 = arith.constant 0 : index
    %c0_23 = arith.constant 0 : index
    %43 = vector.load %arg11[%42, %c0_22, %c0_23] : memref<3x1x1xf32, #tpu.memory_space<vmem>>, vector<1x1x1xf32>
    %44 = vector.shape_cast %43 : vector<1x1x1xf32> to vector<1x1xf32>
    %45 = vector.shape_cast %41 : vector<1x1xf32> to vector<1x1x1xf32>
    tpu.vector_store %arg11[%42, %c0_22, %c0_23], %45 {strides = array<i32>} : memref<3x1x1xf32, #tpu.memory_space<vmem>>, vector<1x1x1xf32>,
    %c0_24 = arith.constant 0 : index
    %c0_25 = arith.constant 0 : index
    %c0_26 = arith.constant 0 : index
    %46 = vector.load %arg6[%c0_24, %c0_25, %c0_26] : memref<1x64x1xf32, #tpu.memory_space<vmem>>, vector<1x64x1xf32>
    %47 = vector.shape_cast %46 : vector<1x64x1xf32> to vector<64x1xf32>
    %cst_27 = arith.constant 5.000000e-06 : f32
    %48 = vector.broadcast %cst_27 : f32 to vector<64x1xf32>
    %49 = arith.mulf %47, %48 : vector<64x1xf32>
    %50 = arith.subf %49, %22 : vector<64x1xf32>
    %51 = arith.index_cast %arg2 : i32 to index
    %c0_28 = arith.constant 0 : index
    %c0_29 = arith.constant 0 : index
    %52 = vector.load %arg12[%51, %c0_28, %c0_29] : memref<3x1x1xf32, #tpu.memory_space<vmem>>, vector<1x1x1xf32>
    %53 = vector.shape_cast %52 : vector<1x1x1xf32> to vector<1x1xf32>
    %54 = arith.mulf %50, %50 : vector<64x1xf32>
    %55 = vector.shape_cast %54 : vector<64x1xf32> to vector<1x64x1xf32>
    %cst_30 = arith.constant dense<0.000000e+00> : vector<1xf32>
    %56 = vector.multi_reduction <add>, %55, %cst_30 [1, 2] : vector<1x64x1xf32> to vector<1xf32>
    %57 = vector.shape_cast %56 : vector<1xf32> to vector<1x1x1xf32>
    %58 = vector.extract %57[0, 0, 0] : f32 from vector<1x1x1xf32>
    %59 = vector.broadcast %58 : f32 to vector<1x1xf32>
    %60 = arith.addf %53, %59 : vector<1x1xf32>
    %61 = arith.index_cast %arg2 : i32 to index
    %c0_31 = arith.constant 0 : index
    %c0_32 = arith.constant 0 : index
    %62 = vector.load %arg12[%61, %c0_31, %c0_32] : memref<3x1x1xf32, #tpu.memory_space<vmem>>, vector<1x1x1xf32>
    %63 = vector.shape_cast %62 : vector<1x1x1xf32> to vector<1x1xf32>
    %64 = vector.shape_cast %60 : vector<1x1xf32> to vector<1x1x1xf32>
    tpu.vector_store %arg12[%61, %c0_31, %c0_32], %64 {strides = array<i32>} : memref<3x1x1xf32, #tpu.memory_space<vmem>>, vector<1x1x1xf32>,
    %c0_i32_33 = arith.constant 0 : i32
    %65 = arith.cmpi eq, %arg1, %c0_i32_33 : i32
    %66 = arith.extui %65 : i1 to i32
    %c0_i32_34 = arith.constant 0 : i32
    %67 = arith.cmpi ne, %66, %c0_i32_34 : i32
    scf.if %67 {
      %68 = arith.index_cast %arg2 : i32 to index
      %c0_35 = arith.constant 0 : index
      %c0_36 = arith.constant 0 : index
      %69 = vector.load %arg11[%68, %c0_35, %c0_36] : memref<3x1x1xf32, #tpu.memory_space<vmem>>, vector<1x1x1xf32>
      %70 = vector.shape_cast %69 : vector<1x1x1xf32> to vector<1x1xf32>
      %c0_37 = arith.constant 0 : index
      %c0_38 = arith.constant 0 : index
      %c0_39 = arith.constant 0 : index
      %c0_40 = arith.constant 0 : index
      %71 = vector.load %arg7[%c0_37, %c0_38, %c0_39, %c0_40] : memref<1x1x1x1xf32, #tpu.memory_space<vmem>>, vector<1x1x1x1xf32>
      %72 = vector.shape_cast %71 : vector<1x1x1x1xf32> to vector<1x1xf32>
      %73 = vector.shape_cast %70 : vector<1x1xf32> to vector<1x1x1x1xf32>
      tpu.vector_store %arg7[%c0_37, %c0_38, %c0_39, %c0_40], %73 {strides = array<i32>} : memref<1x1x1x1xf32, #tpu.memory_space<vmem>>, vector<1x1x1x1xf32>,
      %74 = arith.index_cast %arg2 : i32 to index
      %c0_41 = arith.constant 0 : index
      %c0_42 = arith.constant 0 : index
      %75 = vector.load %arg12[%74, %c0_41, %c0_42] : memref<3x1x1xf32, #tpu.memory_space<vmem>>, vector<1x1x1xf32>
      %76 = vector.shape_cast %75 : vector<1x1x1xf32> to vector<1x1xf32>
      %c0_43 = arith.constant 0 : index
      %c0_44 = arith.constant 0 : index
      %c0_45 = arith.constant 0 : index
      %c0_46 = arith.constant 0 : index
      %77 = vector.load %arg8[%c0_43, %c0_44, %c0_45, %c0_46] : memref<1x1x1x1xf32, #tpu.memory_space<vmem>>, vector<1x1x1x1xf32>
      %78 = vector.shape_cast %77 : vector<1x1x1x1xf32> to vector<1x1xf32>
      %79 = vector.shape_cast %76 : vector<1x1xf32> to vector<1x1x1x1xf32>
      tpu.vector_store %arg8[%c0_43, %c0_44, %c0_45, %c0_46], %79 {strides = array<i32>} : memref<1x1x1x1xf32, #tpu.memory_space<vmem>>, vector<1x1x1x1xf32>,
      %80 = arith.index_cast %arg2 : i32 to index
      %c0_47 = arith.constant 0 : index
      %c0_48 = arith.constant 0 : index
      %81 = vector.load %arg10[%80, %c0_47, %c0_48] : memref<3x1x128xf32, #tpu.memory_space<vmem>>, vector<1x1x128xf32>
      %82 = vector.shape_cast %81 : vector<1x1x128xf32> to vector<1x128xf32>
      %c0_49 = arith.constant 0 : index
      %c0_50 = arith.constant 0 : index
      %c0_51 = arith.constant 0 : index
      %c0_52 = arith.constant 0 : index
      %83 = vector.load %arg9[%c0_49, %c0_50, %c0_51, %c0_52] : memref<1x1x1x128xf32, #tpu.memory_space<vmem>>, vector<1x1x1x128xf32>
      %84 = vector.shape_cast %83 : vector<1x1x1x128xf32> to vector<1x128xf32>
      %85 = vector.shape_cast %82 : vector<1x128xf32> to vector<1x1x1x128xf32>
      tpu.vector_store %arg9[%c0_49, %c0_50, %c0_51, %c0_52], %85 {strides = array<i32>} : memref<1x1x1x128xf32, #tpu.memory_space<vmem>>, vector<1x1x1x128xf32>,
    } else {
    }
    return
  }
  func.func @transform_0(%arg0: i32, %arg1: i32, %arg2: i32) -> (i32, i32, i32) {
    %c1_i32 = arith.constant 1 : i32
    %0 = arith.muli %arg0, %c1_i32 : i32
    %1 = arith.addi %0, %arg1 : i32
    %c0_i32 = arith.constant 0 : i32
    %c0_i32_0 = arith.constant 0 : i32
    return %arg2, %1, %c0_i32 : i32, i32, i32
  }
  func.func @transform_1(%arg0: i32, %arg1: i32, %arg2: i32) -> (i32, i32, i32) {
    %c1_i32 = arith.constant 1 : i32
    %0 = arith.muli %arg0, %c1_i32 : i32
    %1 = arith.addi %0, %arg1 : i32
    %c0_i32 = arith.constant 0 : i32
    %c0_i32_0 = arith.constant 0 : i32
    return %arg2, %1, %c0_i32 : i32, i32, i32
  }
  func.func @transform_2(%arg0: i32, %arg1: i32, %arg2: i32) -> (i32, i32) {
    %c1_i32 = arith.constant 1 : i32
    %0 = arith.muli %arg0, %c1_i32 : i32
    %1 = arith.addi %0, %arg1 : i32
    %c0_i32 = arith.constant 0 : i32
    %c0_i32_0 = arith.constant 0 : i32
    return %1, %c0_i32 : i32, i32
  }
  func.func @transform_3(%arg0: i32, %arg1: i32, %arg2: i32) -> (i32, i32, i32) {
    %c1_i32 = arith.constant 1 : i32
    %0 = arith.muli %arg0, %c1_i32 : i32
    %1 = arith.addi %0, %arg1 : i32
    %c0_i32 = arith.constant 0 : i32
    %c0_i32_0 = arith.constant 0 : i32
    return %arg2, %1, %c0_i32 : i32, i32, i32
  }
  func.func @transform_4(%arg0: i32, %arg1: i32, %arg2: i32) -> (i32, i32, i32, i32) {
    %c0_i32 = arith.constant 0 : i32
    %c0_i32_0 = arith.constant 0 : i32
    %c0_i32_1 = arith.constant 0 : i32
    return %arg2, %arg0, %c0_i32, %c0_i32_0 : i32, i32, i32, i32
  }
  func.func @transform_5(%arg0: i32, %arg1: i32, %arg2: i32) -> (i32, i32, i32, i32) {
    %c0_i32 = arith.constant 0 : i32
    %c0_i32_0 = arith.constant 0 : i32
    %c0_i32_1 = arith.constant 0 : i32
    return %arg2, %arg0, %c0_i32, %c0_i32_0 : i32, i32, i32, i32
  }
  func.func @transform_6(%arg0: i32, %arg1: i32, %arg2: i32) -> (i32, i32, i32, i32) {
    %c0_i32 = arith.constant 0 : i32
    %c0_i32_0 = arith.constant 0 : i32
    %c0_i32_1 = arith.constant 0 : i32
    return %arg2, %arg0, %c0_i32, %c0_i32_0 : i32, i32, i32, i32
  }
}

</mosaic_0001>

<llo_original>
// kernel: tpu_custom_call.1
$region0: #{tpu_custom_call.1}
  #allocation0 [shape = 'u32[]', space=smem, size = 0x4, offset = 0x4, fixed_abs, tag = 'smem constant byte address 0x4 - core index']
  #allocation1 [shape = 'u32[144,128]{1,0:T(1,128)}', space=vmem, size = 0x12000, scoped, tag = 'internal scratch']
  #allocation2 [shape = 'f32[3,1,128]{2,1,0:T(1,128)}', space=vmem, size = 0x600, scoped, tag = 'scratch operand']
  #allocation3 [shape = 'f32[3,1,1]{2,1,0:T(1,128)}', space=vmem, size = 0x600, scoped, tag = 'scratch operand']
  #allocation4 [shape = 'f32[3,1,1]{2,1,0:T(1,128)}', space=vmem, size = 0x600, scoped, tag = 'scratch operand']
  %s0 = inlined_call_operand.vmem [shape: f32[3,128,128], index: 0, kind: input, shape index: {}]
  %s1 = inlined_call_operand.hbm [shape: f32[3,128,128], index: 1, kind: input, shape index: {}]
  %s2 = inlined_call_operand.hbm [shape: s8[128,128], index: 2, kind: input, shape index: {}]
  %s3 = inlined_call_operand.vmem [shape: f32[3,128,1], index: 3, kind: input, shape index: {}]
  %s4 = inlined_call_operand.vmem [shape: f32[3,2,1,1], index: 4, kind: output, shape index: {0}]
  %s5 = inlined_call_operand.vmem [shape: f32[3,2,1,1], index: 5, kind: output, shape index: {1}]
  %s6 = inlined_call_operand.hbm [shape: f32[3,2,1,128], index: 6, kind: output, shape index: {2}]
  %7 = xla_tuple %s4, %s5, %s6
  %s8 = sld [smem:[#allocation0]]
  $region81: #{tpu_custom_call.1} parent=0
    _
  %s10 = ssub.s32 1, %s8
  %s11 = scalar_select 0, %s10, %s8
  $region1: #{tpu_custom_call.1} parent=0
    #allocation5 [shape = 'u8[65536]{0}', space=vmem, size = 0x10000, scoped, tag = 'input window, operand 1']
    #allocation6 [shape = 's32[2]{0}', space=sflag, size = 0x8, scoped, tag = 'scoped memory for tpu_custom_call.1']
    #allocation7 [shape = 's32[2]{0}', space=sflag, size = 0x8, scoped, tag = 'scoped memory for tpu_custom_call.1']
    #allocation8 [shape = 'u8[16384]{0}', space=vmem, size = 0x4000, scoped, tag = 'input window, operand 2']
    #allocation9 [shape = 's32[2]{0}', space=sflag, size = 0x8, scoped, tag = 'scoped memory for tpu_custom_call.1']
    #allocation10 [shape = 'u8[1024]{0}', space=vmem, size = 0x400, scoped, tag = 'output window, operand 2']
    %12 = vsyncpa [#allocation6], 0
    %s13 = scalar_lea.sflag [#allocation6], 1
    %14 = vsyncpa %s13, 0
    %15 = vsyncpa [#allocation9], 0
    %s16 = scalar_lea.sflag [#allocation9], 1
    %17 = vsyncpa %s16, 0
    %18 = vsyncpa [#allocation7], 0
    %s19 = scalar_lea.sflag [#allocation7], 1
    %20 = vsyncpa %s19, 0
    loop: start=0, step=1, limit=8
    $region2: #{tpu_custom_call.1} parent=1 // loop_pre_header
      _
    $region3: #{tpu_custom_call.1} parent=1 // loop_header
      %s22 = sphi 0, %s26
      %p23 = scmp.ge.s32.totalorder %s22, 8
      %s29 = sphi 0, %s48
      %s30 = sphi 0, %s44
      %s31 = sphi 0, %s40
      %s32 = sphi 0, %s29
      %s33 = sphi 0, %s30
      %s34 = sphi 0, %s31
      %s35 = sphi 0, %s32
      %s36 = sphi 0, %s33
      %s37 = sphi 0, %s34
      %s55 = sphi 0, %s57
      %s58 = sphi 0, %s55
      %s59 = sphi 0, %s58
      %s75 = sphi 0, %s59
      %s85 = sphi 0, %s87
      %s88 = sphi 0, %s85
      %s89 = sphi 0, %s88
      %s105 = sphi 0, %s89
      %s113 = sphi 0, %s115
      %s116 = sphi 0, %s113
      %s117 = sphi 0, %s116
      %s133 = sphi 0, %s117
      %s143 = sphi 0, %s145
      %s146 = sphi 0, %s143
      %s147 = sphi 0, %s146
      %s163 = sphi 0, %s147
      %s171 = sphi 0, %s173
      %s174 = sphi 0, %s171
      %s175 = sphi 0, %s174
      %s191 = sphi 0, %s175
      %s199 = sphi 0, %s201
      %s202 = sphi 0, %s199
      %s203 = sphi 0, %s202
      %s219 = sphi 0, %s203
      %s227 = sphi 0, %s229
      %s230 = sphi 0, %s227
      %s231 = sphi 0, %s230
      %s247 = sphi 0, %s231
    $region4: #{tpu_custom_call.1} parent=1 // loop_header_branch
      %25 = sbr.rel (%p23) target = $region8
    $region5: #{tpu_custom_call.1} parent=1 // loop_body
      %s27 = ssub.s32 %s22, 1
      %s28 = ssub.s32 %s22, 2
      %s38 = sadd.s32 1, %s31
      %p39 = scmp.ge.s32.totalorder %s38, 3
      %s40 = scalar_select %p39, 0, %s38
      %s41 = sadd.s32 1, %s30
      %s42 = scalar_select %p39, %s41, %s30
      %p43 = scmp.ge.s32.totalorder %s42, 1
      %s44 = scalar_select %p43, 0, %s42
      %s45 = sadd.s32 1, %s29
      %s46 = scalar_select %p43, %s45, %s29
      %p47 = scmp.ge.s32.totalorder %s46, 2
      %s48 = scalar_select %p47, 0, %s46
      %s49 = sadd.s32 %s29, %s30
      %s50 = sadd.s32 %s48, %s44
      %s51 = ssub.s32 %s31, %s40
      %s52 = ssub.s32 %s49, %s50
      %s53 = sor.u32 %s51, %s52
      %p54 = scmp.eq.s32.totalorder %s53, 0
      %s56 = sadd.s32 %s55, 1
      %s57 = scalar_select %p54, %s55, %s56
      %p60 = pneg %p54
      %p61 = scmp.eq.s32.totalorder %s22, 5
      %p62 = por %p60, %p61
      %p63 = scmp.ne.s32.totalorder %s55, %s58
      %p64 = scmp.eq.s32.totalorder %s22, 0
      %p65 = por %p63, %p64
      %p66 = scmp.ne.s32.totalorder %s55, %s58
      %p67 = scmp.eq.s32.totalorder %s27, 5
      %p68 = por %p66, %p67
      %p69 = scmp.ne.s32.totalorder %s58, %s59
      %p70 = scmp.eq.s32.totalorder %s27, 0
      %p71 = por %p69, %p70
      %p72 = scmp.ne.s32.totalorder %s58, %s59
      %p73 = scmp.eq.s32.totalorder %s28, 5
      %p74 = por %p72, %p73
      %p76 = scmp.ne.s32.totalorder %s59, %s75
      %p77 = scmp.eq.s32.totalorder %s28, 0
      %p78 = por %p76, %p77
      %s79 = sadd.s32 %s29, %s30
      %s80 = sadd.s32 %s48, %s44
      %s81 = ssub.s32 %s31, %s40
      %s82 = ssub.s32 %s79, %s80
      %s83 = sor.u32 %s81, %s82
      %p84 = scmp.eq.s32.totalorder %s83, 0
      %s86 = sadd.s32 %s85, 1
      %s87 = scalar_select %p84, %s85, %s86
      %p90 = pneg %p84
      %p91 = scmp.eq.s32.totalorder %s22, 5
      %p92 = por %p90, %p91
      %p93 = scmp.ne.s32.totalorder %s85, %s88
      %p94 = scmp.eq.s32.totalorder %s22, 0
      %p95 = por %p93, %p94
      %p96 = scmp.ne.s32.totalorder %s85, %s88
      %p97 = scmp.eq.s32.totalorder %s27, 5
      %p98 = por %p96, %p97
      %p99 = scmp.ne.s32.totalorder %s88, %s89
      %p100 = scmp.eq.s32.totalorder %s27, 0
      %p101 = por %p99, %p100
      %p102 = scmp.ne.s32.totalorder %s88, %s89
      %p103 = scmp.eq.s32.totalorder %s28, 5
      %p104 = por %p102, %p103
      %p106 = scmp.ne.s32.totalorder %s89, %s105
      %p107 = scmp.eq.s32.totalorder %s28, 0
      %p108 = por %p106, %p107
      %s109 = sadd.s32 %s29, %s30
      %s110 = sadd.s32 %s48, %s44
      %s111 = ssub.s32 %s109, %s110
      %p112 = scmp.eq.s32.totalorder %s111, 0
      %s114 = sadd.s32 %s113, 1
      %s115 = scalar_select %p112, %s113, %s114
      %p118 = pneg %p112
      %p119 = scmp.eq.s32.totalorder %s22, 5
      %p120 = por %p118, %p119
      %p121 = scmp.ne.s32.totalorder %s113, %s116
      %p122 = scmp.eq.s32.totalorder %s22, 0
      %p123 = por %p121, %p122
      %p124 = scmp.ne.s32.totalorder %s113, %s116
      %p125 = scmp.eq.s32.totalorder %s27, 5
      %p126 = por %p124, %p125
      %p127 = scmp.ne.s32.totalorder %s116, %s117
      %p128 = scmp.eq.s32.totalorder %s27, 0
      %p129 = por %p127, %p128
      %p130 = scmp.ne.s32.totalorder %s116, %s117
      %p131 = scmp.eq.s32.totalorder %s28, 5
      %p132 = por %p130, %p131
      %p134 = scmp.ne.s32.totalorder %s117, %s133
      %p135 = scmp.eq.s32.totalorder %s28, 0
      %p136 = por %p134, %p135
      %s137 = sadd.s32 %s29, %s30
      %s138 = sadd.s32 %s48, %s44
      %s139 = ssub.s32 %s31, %s40
      %s140 = ssub.s32 %s137, %s138
      %s141 = sor.u32 %s139, %s140
      %p142 = scmp.eq.s32.totalorder %s141, 0
      %s144 = sadd.s32 %s143, 1
      %s145 = scalar_select %p142, %s143, %s144
      %p148 = pneg %p142
      %p149 = scmp.eq.s32.totalorder %s22, 5
      %p150 = por %p148, %p149
      %p151 = scmp.ne.s32.totalorder %s143, %s146
      %p152 = scmp.eq.s32.totalorder %s22, 0
      %p153 = por %p151, %p152
      %p154 = scmp.ne.s32.totalorder %s143, %s146
      %p155 = scmp.eq.s32.totalorder %s27, 5
      %p156 = por %p154, %p155
      %p157 = scmp.ne.s32.totalorder %s146, %s147
      %p158 = scmp.eq.s32.totalorder %s27, 0
      %p159 = por %p157, %p158
      %p160 = scmp.ne.s32.totalorder %s146, %s147
      %p161 = scmp.eq.s32.totalorder %s28, 5
      %p162 = por %p160, %p161
      %p164 = scmp.ne.s32.totalorder %s147, %s163
      %p165 = scmp.eq.s32.totalorder %s28, 0
      %p166 = por %p164, %p165
      %s167 = ssub.s32 %s31, %s40
      %s168 = ssub.s32 %s29, %s48
      %s169 = sor.u32 %s167, %s168
      %p170 = scmp.eq.s32.totalorder %s169, 0
      %s172 = sadd.s32 %s171, 1
      %s173 = scalar_select %p170, %s171, %s172
      %p176 = pneg %p170
      %p177 = scmp.eq.s32.totalorder %s22, 5
      %p178 = por %p176, %p177
      %p179 = scmp.ne.s32.totalorder %s171, %s174
      %p180 = scmp.eq.s32.totalorder %s22, 0
      %p181 = por %p179, %p180
      %p182 = scmp.ne.s32.totalorder %s171, %s174
      %p183 = scmp.eq.s32.totalorder %s27, 5
      %p184 = por %p182, %p183
      %p185 = scmp.ne.s32.totalorder %s174, %s175
      %p186 = scmp.eq.s32.totalorder %s27, 0
      %p187 = por %p185, %p186
      %p188 = scmp.ne.s32.totalorder %s174, %s175
      %p189 = scmp.eq.s32.totalorder %s28, 5
      %p190 = por %p188, %p189
      %p192 = scmp.ne.s32.totalorder %s175, %s191
      %p193 = scmp.eq.s32.totalorder %s28, 0
      %p194 = por %p192, %p193
      %s195 = ssub.s32 %s31, %s40
      %s196 = ssub.s32 %s29, %s48
      %s197 = sor.u32 %s195, %s196
      %p198 = scmp.eq.s32.totalorder %s197, 0
      %s200 = sadd.s32 %s199, 1
      %s201 = scalar_select %p198, %s199, %s200
      %p204 = pneg %p198
      %p205 = scmp.eq.s32.totalorder %s22, 5
      %p206 = por %p204, %p205
      %p207 = scmp.ne.s32.totalorder %s199, %s202
      %p208 = scmp.eq.s32.totalorder %s22, 0
      %p209 = por %p207, %p208
      %p210 = scmp.ne.s32.totalorder %s199, %s202
      %p211 = scmp.eq.s32.totalorder %s27, 5
      %p212 = por %p210, %p211
      %p213 = scmp.ne.s32.totalorder %s202, %s203
      %p214 = scmp.eq.s32.totalorder %s27, 0
      %p215 = por %p213, %p214
      %p216 = scmp.ne.s32.totalorder %s202, %s203
      %p217 = scmp.eq.s32.totalorder %s28, 5
      %p218 = por %p216, %p217
      %p220 = scmp.ne.s32.totalorder %s203, %s219
      %p221 = scmp.eq.s32.totalorder %s28, 0
      %p222 = por %p220, %p221
      %s223 = ssub.s32 %s31, %s40
      %s224 = ssub.s32 %s29, %s48
      %s225 = sor.u32 %s223, %s224
      %p226 = scmp.eq.s32.totalorder %s225, 0
      %s228 = sadd.s32 %s227, 1
      %s229 = scalar_select %p226, %s227, %s228
      %p232 = pneg %p226
      %p233 = scmp.eq.s32.totalorder %s22, 5
      %p234 = por %p232, %p233
      %p235 = scmp.ne.s32.totalorder %s227, %s230
      %p236 = scmp.eq.s32.totalorder %s22, 0
      %p237 = por %p235, %p236
      %p238 = scmp.ne.s32.totalorder %s227, %s230
      %p239 = scmp.eq.s32.totalorder %s27, 5
      %p240 = por %p238, %p239
      %p241 = scmp.ne.s32.totalorder %s230, %s231
      %p242 = scmp.eq.s32.totalorder %s27, 0
      %p243 = por %p241, %p242
      %p244 = scmp.ne.s32.totalorder %s230, %s231
      %p245 = scmp.eq.s32.totalorder %s28, 5
      %p246 = por %p244, %p245
      %p248 = scmp.ne.s32.totalorder %s231, %s247
      %p249 = scmp.eq.s32.totalorder %s28, 0
      %p250 = por %p248, %p249
      %p251 = scmp.le.s32.totalorder 1, %s22
      %p252 = scmp.lt.s32.totalorder %s22, 7
      %p253 = pnand %p251, %p252
      %p254 = pneg %p253
      // Predicated region
      $region9: #{tpu_custom_call.1} parent=5 // pred_check
        _
      $region10: #{tpu_custom_call.1} parent=5 // pred_check_branch
        %256 = sbr.rel (%p253) target = $region12
      $region11: #{tpu_custom_call.1} parent=5 // pred_region
        %s257 = ssub.s32 %s22, 1
      $region12: #{tpu_custom_call.1} parent=5 // pred_fallthru
        _
      %p258 = scmp.lt.s32.totalorder %s22, 6
      // Predicated region
      $region13: #{tpu_custom_call.1} parent=5 // pred_check
        %p259 = pneg %p258
      $region14: #{tpu_custom_call.1} parent=5 // pred_check_branch
        %261 = sbr.rel (%p259) target = $region16
      $region15: #{tpu_custom_call.1} parent=5 // pred_region
        // Predicated region
        $region17: #{tpu_custom_call.1} parent=15 // pred_check
          %p262 = pneg %p65
        $region18: #{tpu_custom_call.1} parent=15 // pred_check_branch
          %264 = sbr.rel (%p262) target = $region20
        $region19: #{tpu_custom_call.1} parent=15 // pred_region
          %s265 = sadd.s32 %s29, %s30
          %s266 = smul.u32 8, %s265
          %p267 = scmp.lt.s32.totalorder %s31, 2
          %s268 = scalar_select %p267, %s31, 2
          %p269 = scmp.lt.s32.totalorder %s266, 15
          %s270 = scalar_select %p269, %s266, 15
          %s271 = smul.addr %s268, 16
          %s272 = sadd.s32 %s270, %s271
          %s273 = smul.addr %s272, 8
          %s274 = scalar_lea.vmem %s0, %s273
          %s275 = sadd.s32 %s29, %s30
          %s276 = smul.u32 8, %s275
        $region20: #{tpu_custom_call.1} parent=15 // pred_fallthru
          _
        // Predicated region
        $region21: #{tpu_custom_call.1} parent=15 // pred_check
          %p277 = pneg %p95
        $region22: #{tpu_custom_call.1} parent=15 // pred_check_branch
          %279 = sbr.rel (%p277) target = $region24
        $region23: #{tpu_custom_call.1} parent=15 // pred_region
          %s280 = sand.u32 %s85, 1
          %s281 = scalar_lea.sflag [#allocation6], %s280
          %s282 = sand.u32 %s85, 1
          %s283 = smul.addr %s282, 64
          %s284 = scalar_lea.vmem [#allocation5], %s283
          %s285 = sadd.s32 %s29, %s30
          %s286 = smul.u32 8, %s285
          %s288 = ssub.s32 1024, 1024
          %289 = vsyncadd %s281, %s288
          %s290 = smul.addr %s31, 16
          %s291 = sadd.s32 %s286, %s290
          %s292 = smul.addr %s291, 128
          %s293 = scalar_lea.hbm %s1, %s292
          %s294 = sshll.u32 %s284, 4
          %s295 = int_to_ptr.vmem [resolvable:$true] %s294
          %300 = dma.hbm_to_vmem [thread:$0]  %s293, 1024, %s295, %s281, 128, 128, 8
        $region24: #{tpu_custom_call.1} parent=15 // pred_fallthru
          _
        // Predicated region
        $region25: #{tpu_custom_call.1} parent=15 // pred_check
          %p301 = pneg %p123
        $region26: #{tpu_custom_call.1} parent=15 // pred_check_branch
          %303 = sbr.rel (%p301) target = $region28
        $region27: #{tpu_custom_call.1} parent=15 // pred_region
          %s304 = sand.u32 %s113, 1
          %s305 = scalar_lea.sflag [#allocation9], %s304
          %s306 = sand.u32 %s113, 1
          %s307 = smul.addr %s306, 16
          %s308 = scalar_lea.vmem [#allocation8], %s307
          %s309 = sadd.s32 %s29, %s30
          %s310 = smul.u32 2, %s309
          %s312 = ssub.s32 256, 256
          %313 = vsyncadd %s305, %s312
          %s314 = smul.addr %s310, 128
          %s315 = scalar_lea.hbm %s2, %s314
          %s316 = sshll.u32 %s308, 4
          %s317 = int_to_ptr.vmem [resolvable:$true] %s316
          %322 = dma.hbm_to_vmem [thread:$0]  %s315, 256, %s317, %s305, 128, 128, 8
        $region28: #{tpu_custom_call.1} parent=15 // pred_fallthru
          _
        // Predicated region
        $region29: #{tpu_custom_call.1} parent=15 // pred_check
          %p323 = pneg %p153
        $region30: #{tpu_custom_call.1} parent=15 // pred_check_branch
          %325 = sbr.rel (%p323) target = $region32
        $region31: #{tpu_custom_call.1} parent=15 // pred_region
          %s326 = sadd.s32 %s29, %s30
          %s327 = smul.u32 8, %s326
          %p328 = scmp.lt.s32.totalorder %s31, 2
          %s329 = scalar_select %p328, %s31, 2
          %p330 = scmp.lt.s32.totalorder %s327, 15
          %s331 = scalar_select %p330, %s327, 15
          %s332 = smul.addr %s329, 16
          %s333 = sadd.s32 %s331, %s332
          %s334 = smul.addr %s333, 8
          %s335 = scalar_lea.vmem %s3, %s334
          %s336 = sadd.s32 %s29, %s30
          %s337 = smul.u32 8, %s336
        $region32: #{tpu_custom_call.1} parent=15 // pred_fallthru
          _
      $region16: #{tpu_custom_call.1} parent=5 // pred_fallthru
        _
      %p338 = scmp.le.s32.totalorder 1, %s22
      %p339 = scmp.lt.s32.totalorder %s22, 7
      %p340 = pnand %p338, %p339
      %p341 = pneg %p340
      // Predicated region
      $region33: #{tpu_custom_call.1} parent=5 // pred_check
        _
      $region34: #{tpu_custom_call.1} parent=5 // pred_check_branch
        %343 = sbr.rel (%p340) target = $region36
      $region35: #{tpu_custom_call.1} parent=5 // pred_region
        %s344 = ssub.s32 %s22, 1
        %s345 = sand.u32 %s88, 1
        %s346 = scalar_lea.sflag [#allocation6], %s345
        %s347 = sand.u32 %s88, 1
        %s348 = smul.addr %s347, 64
        %s349 = scalar_lea.vmem [#allocation5], %s348
        // Predicated region
        $region37: #{tpu_custom_call.1} parent=35 // pred_check
          %p350 = pneg %p101
        $region38: #{tpu_custom_call.1} parent=35 // pred_check_branch
          %352 = sbr.rel (%p350) target = $region40
        $region39: #{tpu_custom_call.1} parent=35 // pred_region
          %353 = dma.done %s346, 1024
        $region40: #{tpu_custom_call.1} parent=35 // pred_fallthru
          _
        %s354 = sand.u32 %s116, 1
        %s355 = scalar_lea.sflag [#allocation9], %s354
        %s356 = sand.u32 %s116, 1
        %s357 = smul.addr %s356, 16
        %s358 = scalar_lea.vmem [#allocation8], %s357
        // Predicated region
        $region41: #{tpu_custom_call.1} parent=35 // pred_check
          %p359 = pneg %p129
        $region42: #{tpu_custom_call.1} parent=35 // pred_check_branch
          %361 = sbr.rel (%p359) target = $region44
        $region43: #{tpu_custom_call.1} parent=35 // pred_region
          %362 = dma.done %s355, 256
        $region44: #{tpu_custom_call.1} parent=35 // pred_fallthru
          _
        %s363 = sadd.s32 %s32, %s33
        %s364 = smul.u32 8, %s363
        %p365 = scmp.lt.s32.totalorder %s34, 2
        %s366 = scalar_select %p365, %s34, 2
        %p367 = scmp.lt.s32.totalorder %s364, 15
        %s368 = scalar_select %p367, %s364, 15
        %s369 = smul.addr %s366, 16
        %s370 = sadd.s32 %s368, %s369
        %s371 = smul.addr %s370, 8
        %s372 = scalar_lea.vmem %s0, %s371
        %p373 = pneg %p71
        %p374 = pneg %p68
        %s375 = sand.u32 %s88, 1
        %s376 = scalar_lea.sflag [#allocation6], %s375
        %s377 = sand.u32 %s88, 1
        %s378 = smul.addr %s377, 64
        %s379 = scalar_lea.vmem [#allocation5], %s378
        %p380 = pneg %p101
        %p381 = pneg %p98
        %s382 = sand.u32 %s116, 1
        %s383 = scalar_lea.sflag [#allocation9], %s382
        %s384 = sand.u32 %s116, 1
        %s385 = smul.addr %s384, 16
        %s386 = scalar_lea.vmem [#allocation8], %s385
        %p387 = pneg %p129
        %p388 = pneg %p126
        %s389 = sadd.s32 %s32, %s33
        %s390 = smul.u32 8, %s389
        %p391 = scmp.lt.s32.totalorder %s34, 2
        %s392 = scalar_select %p391, %s34, 2
        %p393 = scmp.lt.s32.totalorder %s390, 15
        %s394 = scalar_select %p393, %s390, 15
        %s395 = smul.addr %s392, 16
        %s396 = sadd.s32 %s394, %s395
        %s397 = smul.addr %s396, 8
        %s398 = scalar_lea.vmem %s3, %s397
        %p399 = pneg %p159
        %p400 = pneg %p156
        %p401 = pneg %p187
        %p402 = pneg %p184
        %p403 = scmp.lt.s32.totalorder %s34, 2
        %s404 = scalar_select %p403, %s34, 2
        %p405 = scmp.lt.s32.totalorder %s32, 1
        %s406 = scalar_select %p405, %s32, 1
        %s407 = smul.addr %s404, 2
        %s408 = sadd.s32 %s406, %s407
        %s409 = scalar_lea.vmem %s4, %s408
        %p410 = pneg %p215
        %p411 = pneg %p212
        %p412 = scmp.lt.s32.totalorder %s34, 2
        %s413 = scalar_select %p412, %s34, 2
        %p414 = scmp.lt.s32.totalorder %s32, 1
        %s415 = scalar_select %p414, %s32, 1
        %s416 = smul.addr %s413, 2
        %s417 = sadd.s32 %s415, %s416
        %s418 = scalar_lea.vmem %s5, %s417
        %p419 = pneg %p243
        %p420 = pneg %p240
        %s421 = sand.u32 %s230, 1
        %s422 = scalar_lea.sflag [#allocation7], %s421
        %s423 = sand.u32 %s230, 1
        %s424 = scalar_lea.vmem [#allocation10], %s423
        %s425 = sadd.s32 %s32, %s33
        %s426 = smul.u32 8, %s425
        %p427 = scmp.lt.s32.totalorder %s34, 2
        %s428 = scalar_select %p427, %s34, 2
        %p429 = scmp.lt.s32.totalorder %s426, 15
        %s430 = scalar_select %p429, %s426, 15
        %s431 = smul.addr %s428, 16
        %s432 = sadd.s32 %s430, %s431
        %s433 = smul.addr %s432, 8
        %s434 = scalar_lea.vmem %s0, %s433
        %s435 = sadd.s32 %s32, %s33
        %s436 = smul.u32 8, %s435
        %s437 = sadd.s32 %s32, %s33
        %s438 = smul.u32 8, %s437
        %s439 = sadd.s32 %s32, %s33
        %s440 = smul.u32 2, %s439
        %s441 = sadd.s32 %s32, %s33
        %s442 = smul.u32 8, %s441
        %p443 = scmp.lt.s32.totalorder %s34, 2
        %s444 = scalar_select %p443, %s34, 2
        %p445 = scmp.lt.s32.totalorder %s442, 15
        %s446 = scalar_select %p445, %s442, 15
        %s447 = smul.addr %s444, 16
        %s448 = sadd.s32 %s446, %s447
        %s449 = smul.addr %s448, 8
        %s450 = scalar_lea.vmem %s3, %s449
        %s451 = sadd.s32 %s32, %s33
        %s452 = smul.u32 8, %s451
        %p453 = scmp.lt.s32.totalorder %s34, 2
        %s454 = scalar_select %p453, %s34, 2
        %p455 = scmp.lt.s32.totalorder %s32, 1
        %s456 = scalar_select %p455, %s32, 1
        %s457 = smul.addr %s454, 2
        %s458 = sadd.s32 %s456, %s457
        %s459 = scalar_lea.vmem %s4, %s458
        %p460 = scmp.lt.s32.totalorder %s34, 2
        %s461 = scalar_select %p460, %s34, 2
        %p462 = scmp.lt.s32.totalorder %s32, 1
        %s463 = scalar_select %p462, %s32, 1
        %s464 = smul.addr %s461, 2
        %s465 = sadd.s32 %s463, %s464
        %s466 = scalar_lea.vmem %s5, %s465
        %p467 = scmp.eq.s32.totalorder %s33, 0
        // Predicated region
        $region45: #{tpu_custom_call.1} parent=35 // pred_check
          %p468 = pneg %p467
        $region46: #{tpu_custom_call.1} parent=35 // pred_check_branch
          %470 = sbr.rel (%p468) target = $region48
        $region47: #{tpu_custom_call.1} parent=35 // pred_region
          %s471 = scalar_lea.vmem [#allocation2], %s34
          %472 = vst [vmem:[%s471] sm:$0x1] 0.0
          %s473 = scalar_lea.vmem [#allocation3], %s34
          %vm474 = vcmask 0
          %475 = vst.msk [vmem:[%s473] sm:$0x1] %vm474, 0.0
          %s476 = scalar_lea.vmem [#allocation4], %s34
          %477 = vst.msk [vmem:[%s476] sm:$0x1] %vm474, 0.0
        $region48: #{tpu_custom_call.1} parent=35 // pred_fallthru
          _
        %v478 = vld [vmem:[%s434] sm:$0xff]
        %v479 = vld [vmem:[%s434 + $0x8] sm:$0xff]
        %v480 = vld [vmem:[%s434 + $0x10] sm:$0xff]
        %v481 = vld [vmem:[%s434 + $0x18] sm:$0xff]
        %v482 = vld [vmem:[%s434 + $0x20] sm:$0xff]
        %v483 = vld [vmem:[%s434 + $0x28] sm:$0xff]
        %v484 = vld [vmem:[%s434 + $0x30] sm:$0xff]
        %v485 = vld [vmem:[%s434 + $0x38] sm:$0xff]
        %v486 = vmax.f32 %v478, 0.01
        %v487 = vmax.f32 %v479, 0.01
        %v488 = vmax.f32 %v480, 0.01
        %v489 = vmax.f32 %v481, 0.01
        %v490 = vmax.f32 %v482, 0.01
        %v491 = vmax.f32 %v483, 0.01
        %v492 = vmax.f32 %v484, 0.01
        %v493 = vmax.f32 %v485, 0.01
        %v494 = vld [vmem:[%s349] sm:$0xff]
        %v495 = vld [vmem:[%s349 + $0x8] sm:$0xff]
        %v496 = vld [vmem:[%s349 + $0x10] sm:$0xff]
        %v497 = vld [vmem:[%s349 + $0x18] sm:$0xff]
        %v498 = vld [vmem:[%s349 + $0x20] sm:$0xff]
        %v499 = vld [vmem:[%s349 + $0x28] sm:$0xff]
        %v500 = vld [vmem:[%s349 + $0x30] sm:$0xff]
        %v501 = vld [vmem:[%s349 + $0x38] sm:$0xff]
        %v502 = vmax.f32 %v494, 1e-10
        %v503 = vmax.f32 %v495, 1e-10
        %v504 = vmax.f32 %v496, 1e-10
        %v505 = vmax.f32 %v497, 1e-10
        %v506 = vmax.f32 %v498, 1e-10
        %v507 = vmax.f32 %v499, 1e-10
        %v508 = vmax.f32 %v500, 1e-10
        %v509 = vmax.f32 %v501, 1e-10
        %v510 = vld [vmem:[%s358] sm:$0xff]
        %v511 = vld [vmem:[%s358 + $0x8] sm:$0xff]
        %v512 = vunpack.c.0.s8 %v510
        %v513 = vunpack.c.1.s8 %v510
        %v514 = vunpack.c.2.s8 %v510
        %v515 = vunpack.c.3.s8 %v510
        %v516 = vunpack.c.0.s8 %v511
        %v517 = vunpack.c.1.s8 %v511
        %v518 = vunpack.c.2.s8 %v511
        %v519 = vunpack.c.3.s8 %v511
        %v520 = vcvt.s32.f32 %v512
        %v521 = vcvt.s32.f32 %v513
        %v522 = vcvt.s32.f32 %v514
        %v523 = vcvt.s32.f32 %v515
        %v524 = vcvt.s32.f32 %v516
        %v525 = vcvt.s32.f32 %v517
        %v526 = vcvt.s32.f32 %v518
        %v527 = vcvt.s32.f32 %v519
        %v528 = vmul.f32 %v502, %v520
        %v529 = vmul.f32 %v503, %v521
        %v530 = vmul.f32 %v504, %v522
        %v531 = vmul.f32 %v505, %v523
        %v532 = vmul.f32 %v506, %v524
        %v533 = vmul.f32 %v507, %v525
        %v534 = vmul.f32 %v508, %v526
        %v535 = vmul.f32 %v509, %v527
        %v536 = vlog2.pop %v486
        %v537 = vmul.f32 %v536, 0.6931472
        %v538 = vlog2.pop %v487
        %v539 = vmul.f32 %v538, 0.6931472
        %v540 = vlog2.pop %v488
        %v541 = vmul.f32 %v540, 0.6931472
        %v542 = vlog2.pop %v489
        %v543 = vmul.f32 %v542, 0.6931472
        %v544 = vlog2.pop %v490
        %v545 = vmul.f32 %v544, 0.6931472
        %v546 = vlog2.pop %v491
        %v547 = vmul.f32 %v546, 0.6931472
        %v548 = vlog2.pop %v492
        %v549 = vmul.f32 %v548, 0.6931472
        %v550 = vlog2.pop %v493
        %v551 = vmul.f32 %v550, 0.6931472
        %v552 = vlog2.pop %v502
        %v553 = vmul.f32 %v552, 0.6931472
        %v554 = vlog2.pop %v503
        %v555 = vmul.f32 %v554, 0.6931472
        %v556 = vlog2.pop %v504
        %v557 = vmul.f32 %v556, 0.6931472
        %v558 = vlog2.pop %v505
        %v559 = vmul.f32 %v558, 0.6931472
        %v560 = vlog2.pop %v506
        %v561 = vmul.f32 %v560, 0.6931472
        %v562 = vlog2.pop %v507
        %v563 = vmul.f32 %v562, 0.6931472
        %v564 = vlog2.pop %v508
        %v565 = vmul.f32 %v564, 0.6931472
        %v566 = vlog2.pop %v509
        %v567 = vmul.f32 %v566, 0.6931472
        %v568 = vsub.f32 %v537, %v553
        %v569 = vsub.f32 %v539, %v555
        %v570 = vsub.f32 %v541, %v557
        %v571 = vsub.f32 %v543, %v559
        %v572 = vsub.f32 %v545, %v561
        %v573 = vsub.f32 %v547, %v563
        %v574 = vsub.f32 %v549, %v565
        %v575 = vsub.f32 %v551, %v567
        %v576 = vadd.f32 %v568, 1.0
        %v577 = vadd.f32 %v569, 1.0
        %v578 = vadd.f32 %v570, 1.0
        %v579 = vadd.f32 %v571, 1.0
        %v580 = vadd.f32 %v572, 1.0
        %v581 = vadd.f32 %v573, 1.0
        %v582 = vadd.f32 %v574, 1.0
        %v583 = vadd.f32 %v575, 1.0
        %v584 = vmul.f32 %v528, %v576
        %v585 = vmul.f32 %v529, %v577
        %v586 = vmul.f32 %v530, %v578
        %v587 = vmul.f32 %v531, %v579
        %v588 = vmul.f32 %v532, %v580
        %v589 = vmul.f32 %v533, %v581
        %v590 = vmul.f32 %v534, %v582
        %v591 = vmul.f32 %v535, %v583
        %592 = vmatprep.subr.mxu0 0.0
        %593 = vmatpush1.msra.mxu0 1.0
        %594 = vmatprep.subr.mxu0 0.0
        %595 = vmatpush1.msra.mxu0 1.0
        %596 = vmatprep.subr.mxu0 0.0
        %597 = vmatpush1.msra.mxu0 1.0
        %598 = vmatprep.subr.mxu0 0.0
        %599 = vmatpush1.msra.mxu0 1.0
        %600 = vmatprep.subr.mxu0 0.0
        %601 = vmatpush1.msra.mxu0 1.0
        %602 = vmatprep.subr.mxu0 0.0
        %603 = vmatpush1.msra.mxu0 1.0
        %604 = vmatprep.subr.mxu0 0.0
        %605 = vmatpush1.msra.mxu0 1.0
        %606 = vmatprep.subr.mxu0 0.0
        %607 = vmatpush1.msra.mxu0 1.0
        %608 = vmatprep.subr.mxu0 0.0
        %609 = vmatpush1.msra.mxu0 1.0
        %610 = vmatprep.subr.mxu0 0.0
        %611 = vmatpush1.msra.mxu0 1.0
        %612 = vmatprep.subr.mxu0 0.0
        %613 = vmatpush1.msra.mxu0 1.0
        %614 = vmatprep.subr.mxu0 0.0
        %615 = vmatpush1.msra.mxu0 1.0
        %616 = vmatprep.subr.mxu0 0.0
        %617 = vmatpush1.msra.mxu0 1.0
        %618 = vmatprep.subr.mxu0 0.0
        %619 = vmatpush1.msra.mxu0 1.0
        %620 = vmatprep.subr.mxu0 0.0
        %621 = vmatpush1.msra.mxu0 1.0
        %622 = vmatprep.subr.mxu0 0.0
        %623 = vmatpush1.msra.mxu0 1.0
        %624 = vmatprep.subr.mxu0 0.0
        %625 = vmatpush1.msra.mxu0 0.0
        %626 = vmatprep.subr.mxu0 0.0
        %627 = vmatpush1.msra.mxu0 0.0
        %628 = vmatprep.subr.mxu0 0.0
        %629 = vmatpush1.msra.mxu0 0.0
        %630 = vmatprep.subr.mxu0 0.0
        %631 = vmatpush1.msra.mxu0 0.0
        %632 = vmatprep.subr.mxu0 0.0
        %633 = vmatpush1.msra.mxu0 0.0
        %634 = vmatprep.subr.mxu0 0.0
        %635 = vmatpush1.msra.mxu0 0.0
        %636 = vmatprep.subr.mxu0 0.0
        %637 = vmatpush1.msra.mxu0 0.0
        %638 = vmatprep.subr.mxu0 0.0
        %639 = vmatpush1.msra.mxu0 0.0
        %640 = vmatprep.subr.mxu0 0.0
        %641 = vmatpush1.msra.mxu0 0.0
        %642 = vmatprep.subr.mxu0 0.0
        %643 = vmatpush1.msra.mxu0 0.0
        %644 = vmatprep.subr.mxu0 0.0
        %645 = vmatpush1.msra.mxu0 0.0
        %646 = vmatprep.subr.mxu0 0.0
        %647 = vmatpush1.msra.mxu0 0.0
        %648 = vmatprep.subr.mxu0 0.0
        %649 = vmatpush1.msra.mxu0 0.0
        %650 = vmatprep.subr.mxu0 0.0
        %651 = vmatpush1.msra.mxu0 0.0
        %652 = vmatprep.subr.mxu0 0.0
        %653 = vmatpush1.msra.mxu0 0.0
        %654 = vmatprep.subr.mxu0 0.0
        %655 = vmatpush1.msra.mxu0 0.0
        %656 = vmatprep.mubr.f32.mxu0 0.0
        %657 = vmatmul.mubr.f32.gmra.mrb[0].mxu0 %v528
        %v658 = vpop.f32.mrb[0].mxu0
        %v659 = vadd.f32 0.0, %v658
        %v660 = vpop.f32.mrb[0].mxu0
        %661 = vmatprep.mubr.f32.mxu0 0.0
        %662 = vmatmul.mubr.f32.gmra.mrb[0].mxu0 %v529
        %v663 = vpop.f32.mrb[0].mxu0
        %v664 = vadd.f32 0.0, %v663
        %v665 = vpop.f32.mrb[0].mxu0
        %666 = vmatprep.mubr.f32.mxu0 0.0
        %667 = vmatmul.mubr.f32.gmra.mrb[0].mxu0 %v530
        %v668 = vpop.f32.mrb[0].mxu0
        %v669 = vadd.f32 0.0, %v668
        %v670 = vpop.f32.mrb[0].mxu0
        %671 = vmatprep.mubr.f32.mxu0 0.0
        %672 = vmatmul.mubr.f32.gmra.mrb[0].mxu0 %v531
        %v673 = vpop.f32.mrb[0].mxu0
        %v674 = vadd.f32 0.0, %v673
        %v675 = vpop.f32.mrb[0].mxu0
        %676 = vmatprep.mubr.f32.mxu0 0.0
        %677 = vmatmul.mubr.f32.gmra.mrb[0].mxu0 %v532
        %v678 = vpop.f32.mrb[0].mxu0
        %v679 = vadd.f32 0.0, %v678
        %v680 = vpop.f32.mrb[0].mxu0
        %681 = vmatprep.mubr.f32.mxu0 0.0
        %682 = vmatmul.mubr.f32.gmra.mrb[0].mxu0 %v533
        %v683 = vpop.f32.mrb[0].mxu0
        %v684 = vadd.f32 0.0, %v683
        %v685 = vpop.f32.mrb[0].mxu0
        %686 = vmatprep.mubr.f32.mxu0 0.0
        %687 = vmatmul.mubr.f32.gmra.mrb[0].mxu0 %v534
        %v688 = vpop.f32.mrb[0].mxu0
        %v689 = vadd.f32 0.0, %v688
        %v690 = vpop.f32.mrb[0].mxu0
        %691 = vmatprep.mubr.f32.mxu0 0.0
        %692 = vmatmul.mubr.f32.gmra.mrb[0].mxu0 %v535
        %v693 = vpop.f32.mrb[0].mxu0
        %v694 = vadd.f32 0.0, %v693
        %v695 = vpop.f32.mrb[0].mxu0
        %696 = vdwg.mxu0
        %s697 = scalar_lea.vmem [#allocation2], %s34
        %v698 = vld [vmem:[%s697] sm:$0x1]
        %vm699 = vcmask 523264
        %v701 = vsel %vm699, 1.0, 0
        %703 = vmatprep.subr.mxu0 0.0
        %704 = vmatpush1.msra.mxu0 %v528
        %705 = vmatprep.subr.mxu0 0.0
        %706 = vmatpush1.msra.mxu0 %v529
        %707 = vmatprep.subr.mxu0 0.0
        %708 = vmatpush1.msra.mxu0 %v530
        %709 = vmatprep.subr.mxu0 0.0
        %710 = vmatpush1.msra.mxu0 %v531
        %711 = vmatprep.subr.mxu0 0.0
        %712 = vmatpush1.msra.mxu0 %v532
        %713 = vmatprep.subr.mxu0 0.0
        %714 = vmatpush1.msra.mxu0 %v533
        %715 = vmatprep.subr.mxu0 0.0
        %716 = vmatpush1.msra.mxu0 %v534
        %717 = vmatprep.subr.mxu0 0.0
        %718 = vmatpush1.msra.mxu0 %v535
        %719 = vmatprep.subr.mxu0 0.0
        %720 = vmatpush1.msra.mxu0 0.0
        %721 = vmatprep.subr.mxu0 0.0
        %722 = vmatpush1.msra.mxu0 0.0
        %723 = vmatprep.subr.mxu0 0.0
        %724 = vmatpush1.msra.mxu0 0.0
        %725 = vmatprep.subr.mxu0 0.0
        %726 = vmatpush1.msra.mxu0 0.0
        %727 = vmatprep.subr.mxu0 0.0
        %728 = vmatpush1.msra.mxu0 0.0
        %729 = vmatprep.subr.mxu0 0.0
        %730 = vmatpush1.msra.mxu0 0.0
        %731 = vmatprep.subr.mxu0 0.0
        %732 = vmatpush1.msra.mxu0 0.0
        %733 = vmatprep.subr.mxu0 0.0
        %734 = vmatpush1.msra.mxu0 0.0
        %735 = vmatprep.subr.mxu0 0.0
        %736 = vmatpush1.msra.mxu0 0.0
        %737 = vmatprep.subr.mxu0 0.0
        %738 = vmatpush1.msra.mxu0 0.0
        %739 = vmatprep.subr.mxu0 0.0
        %740 = vmatpush1.msra.mxu0 0.0
        %741 = vmatprep.subr.mxu0 0.0
        %742 = vmatpush1.msra.mxu0 0.0
        %743 = vmatprep.subr.mxu0 0.0
        %744 = vmatpush1.msra.mxu0 0.0
        %745 = vmatprep.subr.mxu0 0.0
        %746 = vmatpush1.msra.mxu0 0.0
        %747 = vmatprep.subr.mxu0 0.0
        %748 = vmatpush1.msra.mxu0 0.0
        %749 = vmatprep.subr.mxu0 0.0
        %750 = vmatpush1.msra.mxu0 0.0
        %751 = vmatprep.subr.mxu0 0.0
        %752 = vmatpush1.msra.mxu0 0.0
        %753 = vmatprep.subr.mxu0 0.0
        %754 = vmatpush1.msra.mxu0 0.0
        %755 = vmatprep.subr.mxu0 0.0
        %756 = vmatpush1.msra.mxu0 0.0
        %757 = vmatprep.subr.mxu0 0.0
        %758 = vmatpush1.msra.mxu0 0.0
        %759 = vmatprep.subr.mxu0 0.0
        %760 = vmatpush1.msra.mxu0 0.0
        %761 = vmatprep.subr.mxu0 0.0
        %762 = vmatpush1.msra.mxu0 0.0
        %763 = vmatprep.subr.mxu0 0.0
        %764 = vmatpush1.msra.mxu0 0.0
        %765 = vmatprep.subr.mxu0 0.0
        %766 = vmatpush1.msra.mxu0 0.0
        %767 = vmatprep.mubr.f32.mxu0 0.0
        %768 = vmatmul.mubr.f32.gmra.mrb[0].mxu0 %v701
        %v769 = vpop.f32.mrb[0].mxu0
        %v770 = vadd.f32 0.0, %v769
        %v771 = vpop.f32.mrb[0].mxu0
        %772 = vdwg.mxu0
        %v773 = vadd.f32 %v698, %v770
        %774 = vst [vmem:[%s697] sm:$0x1] %v773
        %775 = vmatprep.subr.mxu0 0.0
        %776 = vmatpush1.msra.mxu0 %v584
        %777 = vmatprep.subr.mxu0 0.0
        %778 = vmatpush1.msra.mxu0 %v585
        %779 = vmatprep.subr.mxu0 0.0
        %780 = vmatpush1.msra.mxu0 %v586
        %781 = vmatprep.subr.mxu0 0.0
        %782 = vmatpush1.msra.mxu0 %v587
        %783 = vmatprep.subr.mxu0 0.0
        %784 = vmatpush1.msra.mxu0 %v588
        %785 = vmatprep.subr.mxu0 0.0
        %786 = vmatpush1.msra.mxu0 %v589
        %787 = vmatprep.subr.mxu0 0.0
        %788 = vmatpush1.msra.mxu0 %v590
        %789 = vmatprep.subr.mxu0 0.0
        %790 = vmatpush1.msra.mxu0 %v591
        %791 = vmatprep.subr.mxu0 0.0
        %792 = vmatpush1.msra.mxu0 0.0
        %793 = vmatprep.subr.mxu0 0.0
        %794 = vmatpush1.msra.mxu0 0.0
        %795 = vmatprep.subr.mxu0 0.0
        %796 = vmatpush1.msra.mxu0 0.0
        %797 = vmatprep.subr.mxu0 0.0
        %798 = vmatpush1.msra.mxu0 0.0
        %799 = vmatprep.subr.mxu0 0.0
        %800 = vmatpush1.msra.mxu0 0.0
        %801 = vmatprep.subr.mxu0 0.0
        %802 = vmatpush1.msra.mxu0 0.0
        %803 = vmatprep.subr.mxu0 0.0
        %804 = vmatpush1.msra.mxu0 0.0
        %805 = vmatprep.subr.mxu0 0.0
        %806 = vmatpush1.msra.mxu0 0.0
        %807 = vmatprep.subr.mxu0 0.0
        %808 = vmatpush1.msra.mxu0 0.0
        %809 = vmatprep.subr.mxu0 0.0
        %810 = vmatpush1.msra.mxu0 0.0
        %811 = vmatprep.subr.mxu0 0.0
        %812 = vmatpush1.msra.mxu0 0.0
        %813 = vmatprep.subr.mxu0 0.0
        %814 = vmatpush1.msra.mxu0 0.0
        %815 = vmatprep.subr.mxu0 0.0
        %816 = vmatpush1.msra.mxu0 0.0
        %817 = vmatprep.subr.mxu0 0.0
        %818 = vmatpush1.msra.mxu0 0.0
        %819 = vmatprep.subr.mxu0 0.0
        %820 = vmatpush1.msra.mxu0 0.0
        %821 = vmatprep.subr.mxu0 0.0
        %822 = vmatpush1.msra.mxu0 0.0
        %823 = vmatprep.subr.mxu0 0.0
        %824 = vmatpush1.msra.mxu0 0.0
        %825 = vmatprep.subr.mxu0 0.0
        %826 = vmatpush1.msra.mxu0 0.0
        %827 = vmatprep.subr.mxu0 0.0
        %828 = vmatpush1.msra.mxu0 0.0
        %829 = vmatprep.subr.mxu0 0.0
        %830 = vmatpush1.msra.mxu0 0.0
        %831 = vmatprep.subr.mxu0 0.0
        %832 = vmatpush1.msra.mxu0 0.0
        %833 = vmatprep.subr.mxu0 0.0
        %834 = vmatpush1.msra.mxu0 0.0
        %835 = vmatprep.subr.mxu0 0.0
        %836 = vmatpush1.msra.mxu0 0.0
        %837 = vmatprep.subr.mxu0 0.0
        %838 = vmatpush1.msra.mxu0 0.0
        %839 = vmatprep.mubr.f32.mxu0 0.0
        %840 = vmatmul.mubr.f32.gmra.mrb[0].mxu0 %v701
        %v841 = vpop.f32.mrb[0].mxu0
        %v842 = vadd.f32 0.0, %v841
        %v843 = vpop.f32.mrb[0].mxu0
        %844 = vdwg.mxu0
        %s845 = scalar_lea.vmem [#allocation3], %s34
        %v846 = vld [vmem:[%s845] sm:$0x1]
        %vm847 = vcmask 1040384
        %v848 = vsel %vm847, %v842, 0.0
        %849 = vadd.xlane.f32.xlu0 %v848
        %v850 = vpop.xlane.xlu0 %849
        %v851 = vrot.slane %v850, 4
        %v852 = vadd.f32 %v850, %v851
        %v853 = vrot.slane %v852, 2
        %v854 = vadd.f32 %v852, %v853
        %v855 = vrot.slane %v854, 1
        %v856 = vadd.f32 %v854, %v855
        %s857 = vtos %v856
        %v858 = vstv %s857
        %v859 = vadd.f32 %v846, %v858
        %vm860 = vcmask 0
        %861 = vst.msk [vmem:[%s845] sm:$0x1] %vm860, %v859
        %v862 = vld [vmem:[%s450] sm:$0xff]
        %v863 = vld [vmem:[%s450 + $0x8] sm:$0xff]
        %v864 = vld [vmem:[%s450 + $0x10] sm:$0xff]
        %v865 = vld [vmem:[%s450 + $0x18] sm:$0xff]
        %v866 = vld [vmem:[%s450 + $0x20] sm:$0xff]
        %v867 = vld [vmem:[%s450 + $0x28] sm:$0xff]
        %v868 = vld [vmem:[%s450 + $0x30] sm:$0xff]
        %v869 = vld [vmem:[%s450 + $0x38] sm:$0xff]
        %v870 = vmul.f32 %v862, 5e-06
        %v871 = vmul.f32 %v863, 5e-06
        %v872 = vmul.f32 %v864, 5e-06
        %v873 = vmul.f32 %v865, 5e-06
        %v874 = vmul.f32 %v866, 5e-06
        %v875 = vmul.f32 %v867, 5e-06
        %v876 = vmul.f32 %v868, 5e-06
        %v877 = vmul.f32 %v869, 5e-06
        %v878 = vsub.f32 %v870, %v659
        %v879 = vsub.f32 %v871, %v664
        %v880 = vsub.f32 %v872, %v669
        %v881 = vsub.f32 %v873, %v674
        %v882 = vsub.f32 %v874, %v679
        %v883 = vsub.f32 %v875, %v684
        %v884 = vsub.f32 %v876, %v689
        %v885 = vsub.f32 %v877, %v694
        %s886 = scalar_lea.vmem [#allocation4], %s34
        %v887 = vld [vmem:[%s886] sm:$0x1]
        %v888 = vmul.f32 %v878, %v878
        %v889 = vmul.f32 %v879, %v879
        %v890 = vmul.f32 %v880, %v880
        %v891 = vmul.f32 %v881, %v881
        %v892 = vmul.f32 %v882, %v882
        %v893 = vmul.f32 %v883, %v883
        %v894 = vmul.f32 %v884, %v884
        %v895 = vmul.f32 %v885, %v885
        %vm896 = vcmask 7168
        %v897 = vsel %vm896, %v888, 0.0
        %v898 = vsel %vm896, %v889, 0.0
        %v899 = vadd.f32 %v897, %v898
        %v900 = vsel %vm896, %v890, 0.0
        %v901 = vadd.f32 %v899, %v900
        %v902 = vsel %vm896, %v891, 0.0
        %v903 = vadd.f32 %v901, %v902
        %v904 = vsel %vm896, %v892, 0.0
        %v905 = vadd.f32 %v903, %v904
        %v906 = vsel %vm896, %v893, 0.0
        %v907 = vadd.f32 %v905, %v906
        %v908 = vsel %vm896, %v894, 0.0
        %v909 = vadd.f32 %v907, %v908
        %v910 = vsel %vm896, %v895, 0.0
        %v911 = vadd.f32 %v909, %v910
        %912 = vadd.xlane.f32.xlu0 %v911
        %v913 = vpop.xlane.xlu0 %912
        %v914 = vrot.slane %v913, 4
        %v915 = vadd.f32 %v913, %v914
        %v916 = vrot.slane %v915, 2
        %v917 = vadd.f32 %v915, %v916
        %v918 = vrot.slane %v917, 1
        %v919 = vadd.f32 %v917, %v918
        %s920 = vtos %v919
        %v921 = vstv %s920
        %v922 = vadd.f32 %v887, %v921
        %923 = vst.msk [vmem:[%s886] sm:$0x1] %vm860, %v922
        // Predicated region
        $region49: #{tpu_custom_call.1} parent=35 // pred_check
          %p924 = pneg %p467
        $region50: #{tpu_custom_call.1} parent=35 // pred_check_branch
          %926 = sbr.rel (%p924) target = $region52
        $region51: #{tpu_custom_call.1} parent=35 // pred_region
          %v927 = vld [vmem:[%s845] sm:$0x1]
          %928 = vst.msk [vmem:[%s459] sm:$0x1] %vm860, %v927
          %v929 = vld [vmem:[%s886] sm:$0x1]
          %930 = vst.msk [vmem:[%s466] sm:$0x1] %vm860, %v929
          %v931 = vld [vmem:[%s697] sm:$0x1]
          %932 = vst [vmem:[%s424] sm:$0x1] %v931
        $region52: #{tpu_custom_call.1} parent=35 // pred_fallthru
          _
        %p933 = scmp.lt.s32.totalorder %s34, 2
        %s934 = scalar_select %p933, %s34, 2
        %p935 = scmp.lt.s32.totalorder %s32, 1
        %s936 = scalar_select %p935, %s32, 1
        %s937 = smul.addr %s934, 2
        %s938 = sadd.s32 %s936, %s937
        %s939 = scalar_lea.vmem %s4, %s938
        %p940 = scmp.lt.s32.totalorder %s34, 2
        %s941 = scalar_select %p940, %s34, 2
        %p942 = scmp.lt.s32.totalorder %s32, 1
        %s943 = scalar_select %p942, %s32, 1
        %s944 = smul.addr %s941, 2
        %s945 = sadd.s32 %s943, %s944
        %s946 = scalar_lea.vmem %s5, %s945
        %s947 = sand.u32 %s230, 1
        %s948 = scalar_lea.sflag [#allocation7], %s947
        %s949 = sand.u32 %s230, 1
        %s950 = scalar_lea.vmem [#allocation10], %s949
        // Predicated region
        $region53: #{tpu_custom_call.1} parent=35 // pred_check
          %p951 = pneg %p184
        $region54: #{tpu_custom_call.1} parent=35 // pred_check_branch
          %953 = sbr.rel (%p951) target = $region56
        $region55: #{tpu_custom_call.1} parent=35 // pred_region
          _
        $region56: #{tpu_custom_call.1} parent=35 // pred_fallthru
          _
        // Predicated region
        $region57: #{tpu_custom_call.1} parent=35 // pred_check
          %p954 = pneg %p212
        $region58: #{tpu_custom_call.1} parent=35 // pred_check_branch
          %956 = sbr.rel (%p954) target = $region60
        $region59: #{tpu_custom_call.1} parent=35 // pred_region
          _
        $region60: #{tpu_custom_call.1} parent=35 // pred_fallthru
          _
        // Predicated region
        $region61: #{tpu_custom_call.1} parent=35 // pred_check
          %p957 = pneg %p240
        $region62: #{tpu_custom_call.1} parent=35 // pred_check_branch
          %959 = sbr.rel (%p957) target = $region64
        $region63: #{tpu_custom_call.1} parent=35 // pred_region
          %s961 = ssub.s32 16, 16
          %962 = vsyncadd %s948, %s961
          %s963 = smul.addr %s34, 2
          %s964 = sadd.s32 %s32, %s963
          %s965 = smul.addr %s964, 16
          %s966 = scalar_lea.hbm %s6, %s965
          %s968 = sshll.u32 %s950, 4
          %s969 = int_to_ptr.vmem [resolvable:$true] %s968
          %971 = dma.vmem_to_hbm [thread:$0]  %s969, 16, %s966, %s948
        $region64: #{tpu_custom_call.1} parent=35 // pred_fallthru
          _
      $region36: #{tpu_custom_call.1} parent=5 // pred_fallthru
        _
      %p972 = scmp.le.s32.totalorder 2, %s22
      // Predicated region
      $region65: #{tpu_custom_call.1} parent=5 // pred_check
        %p973 = pneg %p972
      $region66: #{tpu_custom_call.1} parent=5 // pred_check_branch
        %975 = sbr.rel (%p973) target = $region68
      $region67: #{tpu_custom_call.1} parent=5 // pred_region
        %s976 = ssub.s32 %s22, 2
        // Predicated region
        $region69: #{tpu_custom_call.1} parent=67 // pred_check
          %p977 = pneg %p190
        $region70: #{tpu_custom_call.1} parent=67 // pred_check_branch
          %979 = sbr.rel (%p977) target = $region72
        $region71: #{tpu_custom_call.1} parent=67 // pred_region
          %p980 = scmp.lt.s32.totalorder %s37, 2
          %s981 = scalar_select %p980, %s37, 2
          %p982 = scmp.lt.s32.totalorder %s35, 1
          %s983 = scalar_select %p982, %s35, 1
          %s984 = smul.addr %s981, 2
          %s985 = sadd.s32 %s983, %s984
          %s986 = scalar_lea.vmem %s4, %s985
        $region72: #{tpu_custom_call.1} parent=67 // pred_fallthru
          _
        // Predicated region
        $region73: #{tpu_custom_call.1} parent=67 // pred_check
          %p987 = pneg %p218
        $region74: #{tpu_custom_call.1} parent=67 // pred_check_branch
          %989 = sbr.rel (%p987) target = $region76
        $region75: #{tpu_custom_call.1} parent=67 // pred_region
          %p990 = scmp.lt.s32.totalorder %s37, 2
          %s991 = scalar_select %p990, %s37, 2
          %p992 = scmp.lt.s32.totalorder %s35, 1
          %s993 = scalar_select %p992, %s35, 1
          %s994 = smul.addr %s991, 2
          %s995 = sadd.s32 %s993, %s994
          %s996 = scalar_lea.vmem %s5, %s995
        $region76: #{tpu_custom_call.1} parent=67 // pred_fallthru
          _
        // Predicated region
        $region77: #{tpu_custom_call.1} parent=67 // pred_check
          %p997 = pneg %p246
        $region78: #{tpu_custom_call.1} parent=67 // pred_check_branch
          %999 = sbr.rel (%p997) target = $region80
        $region79: #{tpu_custom_call.1} parent=67 // pred_region
          %s1000 = sand.u32 %s231, 1
          %s1001 = scalar_lea.sflag [#allocation7], %s1000
          %s1002 = sand.u32 %s231, 1
          %s1003 = scalar_lea.vmem [#allocation10], %s1002
          %1004 = dma.done %s1001, 16
        $region80: #{tpu_custom_call.1} parent=67 // pred_fallthru
          _
      $region68: #{tpu_custom_call.1} parent=5 // pred_fallthru
        _
    $region6: #{tpu_custom_call.1} parent=1 // loop_footer
      %s26 = sadd.s32 1, %s22
    $region7: #{tpu_custom_call.1} parent=1 // loop_footer_branch
      %21 = sbr.rel target = $region3
    $region8: #{tpu_custom_call.1} parent=1 // loop_exit
      _
    %1005 = vsyncpa [#allocation6], 1
    %s1006 = scalar_lea.sflag [#allocation6], 1
    %1007 = vsyncpa %s1006, 1
    %1008 = vsyncpa [#allocation9], 1
    %s1009 = scalar_lea.sflag [#allocation9], 1
    %1010 = vsyncpa %s1009, 1
    %1011 = vsyncpa [#allocation7], 1
    %s1012 = scalar_lea.sflag [#allocation7], 1
    %1013 = vsyncpa %s1012, 1

</llo_original>
